<compile_context>
chip_gen: v5e
topology: v5e:2x2
jax: 0.10.0
libtpu: 0.0.40
codegen_flags: <defaults>
</compile_context>

<pallas_src>
import jax
import jax.numpy as jnp
import numpy as np
from jax.experimental import pallas as pl
from jax.experimental.pallas import tpu as pltpu

PAD = 4

# Keep the double-buffered, lane-padded block footprint under this budget so
# the same tiling is safe on v7x (64 MiB physical VMEM); v5e/v6e have 128 MiB.
_VMEM_BLOCK_BUDGET = 40 << 20
_VMEM_LIMIT_FLOOR = 32 << 20
_VMEM_LIMIT_CAP = 48 << 20


def _round_up(v, m):
    return (v + m - 1) // m * m


def _vreg_padded_bytes(shape, itemsize=4):
    """VMEM bytes of an f32 block: second-minor pads to 8, minor pads to 128."""
    lead = int(np.prod(shape[:-2], dtype=np.int64)) if len(shape) > 2 else 1
    return lead * _round_up(shape[-2], 8) * _round_up(shape[-1], 128) * itemsize


def _block_footprint_bytes(bn, c, h, w):
    img = _vreg_padded_bytes((bn * c, h, w))
    wy = _vreg_padded_bytes((bn, h, h))
    wxt = _vreg_padded_bytes((bn, w, w))
    # (input block + output block + two weight blocks), each double-buffered.
    return 2 * (2 * img + wy + wxt)


# ----------------------------------------------------------------------------
# Sampling-grid construction (faithful to the given PyTorch module: per-axis
# eps / shift scaling, align_corners=False), shared by kernel and reference.
# ----------------------------------------------------------------------------
def _pixel_coords(n, h, w, pad, key, dtype=jnp.float32):
    """Returns (iy, ix): pixel-space sample coords into the PADDED image.

    iy: (N, H) -- row coordinate for each output row (per batch)
    ix: (N, W) -- col coordinate for each output col (per batch)
    """
    hp = h + 2 * pad
    wp = w + 2 * pad

    eps_x = 1.0 / wp
    arange_x = jnp.linspace(-1.0 + eps_x, 1.0 - eps_x, wp, dtype=dtype)[:w]
    eps_y = 1.0 / hp
    arange_y = jnp.linspace(-1.0 + eps_y, 1.0 - eps_y, hp, dtype=dtype)[:h]

    # integer shift in [0, 2*pad] per batch for (x, y)
    # TODO(synk): torch.randint RNG stream replaced by jax.random.randint
    # (shift values are in the same range but not bit-identical to PyTorch).
    shift = jax.random.randint(key, (n, 2), 0, 2 * pad + 1).astype(dtype)
    gx = arange_x[None, :] + (shift[:, 0] * (2.0 / wp))[:, None]   # (N, W)
    gy = arange_y[None, :] + (shift[:, 1] * (2.0 / hp))[:, None]   # (N, H)

    # grid_sample align_corners=False: normalized -> pixel coords (padded img)
    ix = ((gx + 1.0) * wp - 1.0) / 2.0
    iy = ((gy + 1.0) * hp - 1.0) / 2.0
    return iy, ix


def _fold_weights(coords, size, pad, dtype=jnp.float32, transpose=False):
    """1-D bilinear interpolation weights against the UNPADDED axis.

    `coords` are pixel coordinates into the padded axis (length size+2*pad).
    Edge replication is folded in: taps landing in the replicated border are
    clamped to the first/last unpadded sample and their weights accumulate.
    Taps outside the padded extent get weight 0 (== padding_mode='zeros').

    Returns (N, M, size), or (N, size, M) when transpose=True.
    """
    sp = size + 2 * pad
    c0f = jnp.floor(coords)
    frac = (coords - c0f).astype(jnp.float32)
    c0 = c0f.astype(jnp.int32)
    cols = jnp.arange(size, dtype=jnp.int32)

    def tap(ci, wgt):
        valid = ((ci >= 0) & (ci < sp)).astype(jnp.float32)
        r = jnp.clip(ci - pad, 0, size - 1)                 # (N, M)
        wv = wgt * valid                                    # (N, M)
        if transpose:
            onehot = (cols[None, :, None] == r[:, None, :]).astype(jnp.float32)
            return onehot * wv[:, None, :]                  # (N, size, M)
        onehot = (r[:, :, None] == cols[None, None, :]).astype(jnp.float32)
        return onehot * wv[:, :, None]                      # (N, M, size)

    return (tap(c0, 1.0 - frac) + tap(c0 + 1, frac)).astype(dtype)


# ----------------------------------------------------------------------------
# Pallas kernel: separable bilinear resample, one batch block per grid step.
# ----------------------------------------------------------------------------
def _make_kernel(bn, c):
    def kernel(x_ref, wy_ref, wxt_ref, o_ref):
        # x_ref / o_ref: (bn, C, H, W)
        # wy_ref       : (bn, H, H)  row-interp weights (out_row x in_row)
        # wxt_ref      : (bn, W, W)  col-interp weights, already transposed
        @pl.loop(0, bn)
        def _(b):
            wy = wy_ref[b]                 # (H, H)
            wxt = wxt_ref[b]               # (W, W)
            for ci in range(c):            # short static channel loop
                xc = x_ref[b, ci]          # (H, W)
                t = jnp.dot(xc, wxt, preferred_element_type=jnp.float32)
                oc = jnp.dot(wy, t, preferred_element_type=jnp.float32)
                o_ref[b, ci] = oc.astype(o_ref.dtype)
    return kernel


def random_shifts_aug(x, key, pad=PAD, aug=True, max_batch_block=16):
    if not aug:
        return x
    n, c, h, w = x.shape
    out_dtype = x.dtype

    iy, ix = _pixel_coords(n, h, w, pad, key, jnp.float32)
    wy_mat = _fold_weights(iy, h, pad, jnp.float32)                   # (N,H,H)
    wxt_mat = _fold_weights(ix, w, pad, jnp.float32, transpose=True)  # (N,W,W)

    # Batch block: as large as the (v7x-safe) VMEM budget allows.
    bn = min(max_batch_block, n)
    while bn > 1 and _block_footprint_bytes(bn, c, h, w) > _VMEM_BLOCK_BUDGET:
        bn -= 1
    steps = pl.cdiv(n, bn)
    bn = pl.cdiv(n, steps)      # rebalance: padded tail is at most bn-1 batches
    n_pad = bn * steps

    if n_pad != n:
        bpad = ((0, n_pad - n),)
        x = jnp.pad(x, bpad + ((0, 0),) * 3)
        wy_mat = jnp.pad(wy_mat, bpad + ((0, 0),) * 2)
        wxt_mat = jnp.pad(wxt_mat, bpad + ((0, 0),) * 2)

    footprint = _block_footprint_bytes(bn, c, h, w)
    vmem_limit = int(min(max(footprint + (16 << 20), _VMEM_LIMIT_FLOOR),
                         _VMEM_LIMIT_CAP))

    flops = 2 * n_pad * c * h * w * (h + w)
    bytes_accessed = 4 * (2 * n_pad * c * h * w + n_pad * (h * h + w * w))

    out = pl.pallas_call(
        _make_kernel(bn, c),
        out_shape=jax.ShapeDtypeStruct((n_pad, c, h, w), out_dtype),
        grid_spec=pltpu.PrefetchScalarGridSpec(
            num_scalar_prefetch=0,
            grid=(steps,),
            in_specs=[
                pl.BlockSpec((bn, c, h, w), lambda i: (i, 0, 0, 0)),
                pl.BlockSpec((bn, h, h), lambda i: (i, 0, 0)),
                pl.BlockSpec((bn, w, w), lambda i: (i, 0, 0)),
            ],
            out_specs=pl.BlockSpec((bn, c, h, w), lambda i: (i, 0, 0, 0)),
        ),
        compiler_params=pltpu.CompilerParams(
            dimension_semantics=("parallel",),
            vmem_limit_bytes=vmem_limit),
        cost_estimate=pl.CostEstimate(
            flops=flops, transcendentals=0, bytes_accessed=bytes_accessed),
    )(x, wy_mat, wxt_mat)

    return out[:n] if n_pad != n else out


# ----------------------------------------------------------------------------
# Pure-JAX reference (explicit edge pad + gather-based bilinear grid_sample
# with zeros padding) -- a different code path from the folded-weight kernel.
# ----------------------------------------------------------------------------
def random_shifts_aug_ref(x, key, pad=PAD):
    n, c, h, w = x.shape
    hp, wp = h + 2 * pad, w + 2 * pad
    x_pad = jnp.pad(x, ((0, 0), (0, 0), (pad, pad), (pad, pad)), mode="edge")
    iy, ix = _pixel_coords(n, h, w, pad, key, jnp.float32)

    y0 = jnp.floor(iy).astype(jnp.int32)
    fy = iy - jnp.floor(iy)
    x0 = jnp.floor(ix).astype(jnp.int32)
    fx = ix - jnp.floor(ix)

    def gather(yi, xi):
        valid = (((yi >= 0) & (yi < hp))[:, None, :, None]
                 & ((xi >= 0) & (xi < wp))[:, None, None, :])
        yc = jnp.clip(yi, 0, hp - 1)
        xc = jnp.clip(xi, 0, wp - 1)
        v = x_pad[jnp.arange(n)[:, None, None, None],
                  jnp.arange(c)[None, :, None, None],
                  yc[:, None, :, None],
                  xc[:, None, None, :]]
        return jnp.where(valid, v, 0.0)

    wy0 = (1.0 - fy)[:, None, :, None]
    wy1 = fy[:, None, :, None]
    wx0 = (1.0 - fx)[:, None, None, :]
    wx1 = fx[:, None, None, :]
    return (wy0 * wx0 * gather(y0, x0) + wy0 * wx1 * gather(y0, x0 + 1)
            + wy1 * wx0 * gather(y0 + 1, x0) + wy1 * wx1 * gather(y0 + 1, x0 + 1))


if __name__ == "__main__":
    key = jax.random.PRNGKey(0)
    kx1, ks1, kx2, ks2, kx3, ks3 = jax.random.split(key, 6)

    # case 1: small square images
    x = jax.random.normal(kx1, (2, 4, 16, 16), dtype=jnp.float32)
    out = jax.block_until_ready(random_shifts_aug(x, ks1, pad=PAD, aug=True))
    assert out.shape == x.shape, (out.shape, x.shape)
    assert out.dtype == x.dtype
    ref = jax.block_until_ready(random_shifts_aug_ref(x, ks1, pad=PAD))
    np.testing.assert_allclose(np.asarray(out), np.asarray(ref),
                               rtol=2e-2, atol=2e-2)

    # case 2: non-square images (this spec variant uses per-axis eps / shift)
    x2 = jax.random.normal(kx2, (3, 9, 16, 24), dtype=jnp.float32)
    out2 = jax.block_until_ready(random_shifts_aug(x2, ks2, pad=PAD, aug=True))
    assert out2.shape == x2.shape and out2.dtype == x2.dtype
    ref2 = jax.block_until_ready(random_shifts_aug_ref(x2, ks2, pad=PAD))
    np.testing.assert_allclose(np.asarray(out2), np.asarray(ref2),
                               rtol=2e-2, atol=2e-2)

    # case 3: batch not divisible by the batch block (exercises tail padding)
    x3 = jax.random.normal(kx3, (5, 3, 16, 16), dtype=jnp.float32)
    out3 = jax.block_until_ready(
        random_shifts_aug(x3, ks3, pad=PAD, aug=True, max_batch_block=2))
    assert out3.shape == x3.shape and out3.dtype == x3.dtype
    ref3 = jax.block_until_ready(random_shifts_aug_ref(x3, ks3, pad=PAD))
    np.testing.assert_allclose(np.asarray(out3), np.asarray(ref3),
                               rtol=2e-2, atol=2e-2)

    print("KERNEL_OK")
</pallas_src>

<mosaic_0001>
module attributes {stable_mosaic.version = 11 : i64} {
  func.func @kernel(%arg0: i32, %arg1: memref<2x4x16x16xf32, #tpu.memory_space<vmem>>, %arg2: memref<2x16x16xf32, #tpu.memory_space<vmem>>, %arg3: memref<2x16x16xf32, #tpu.memory_space<vmem>>, %arg4: memref<2x4x16x16xf32, #tpu.memory_space<vmem>>) attributes {dimension_semantics = [#tpu.dimension_semantics<parallel>], iteration_bounds = array<i64: 1>, scalar_prefetch = 0 : i64, scratch_operands = 0 : i64, tpu.core_type = #tpu.core_type<tc>, window_params = [{transform_indices = @transform_0, window_bounds = array<i64: 2, 4, 16, 16>}, {transform_indices = @transform_1, window_bounds = array<i64: 2, 16, 16>}, {transform_indices = @transform_2, window_bounds = array<i64: 2, 16, 16>}, {transform_indices = @transform_3, window_bounds = array<i64: 2, 4, 16, 16>}]} {
    %c0_i32 = arith.constant 0 : i32
    %c2_i32 = arith.constant 2 : i32
    %0 = arith.addi %c0_i32, %c2_i32 : i32
    %c1_i32 = arith.constant 1 : i32
    scf.for %arg5 = %c0_i32 to %0 step %c1_i32  : i32 {
      %c1_i32_1 = arith.constant 1 : i32
      %1 = arith.muli %arg5, %c1_i32_1 : i32
      %c0_i32_2 = arith.constant 0 : i32
      %2 = arith.addi %c0_i32_2, %1 : i32
      %3 = arith.index_cast %2 : i32 to index
      %c0 = arith.constant 0 : index
      %c0_3 = arith.constant 0 : index
      %4 = vector.load %arg2[%3, %c0, %c0_3] : memref<2x16x16xf32, #tpu.memory_space<vmem>>, vector<1x16x16xf32>
      %5 = vector.shape_cast %4 : vector<1x16x16xf32> to vector<16x16xf32>
      %6 = arith.index_cast %2 : i32 to index
      %c0_4 = arith.constant 0 : index
      %c0_5 = arith.constant 0 : index
      %7 = vector.load %arg3[%6, %c0_4, %c0_5] : memref<2x16x16xf32, #tpu.memory_space<vmem>>, vector<1x16x16xf32>
      %8 = vector.shape_cast %7 : vector<1x16x16xf32> to vector<16x16xf32>
      %9 = arith.index_cast %2 : i32 to index
      %c0_6 = arith.constant 0 : index
      %c0_7 = arith.constant 0 : index
      %c0_8 = arith.constant 0 : index
      %10 = vector.load %arg1[%9, %c0_6, %c0_7, %c0_8] : memref<2x4x16x16xf32, #tpu.memory_space<vmem>>, vector<1x1x16x16xf32>
      %11 = vector.shape_cast %10 : vector<1x1x16x16xf32> to vector<16x16xf32>
      %cst = arith.constant dense<0.000000e+00> : vector<16x16xf32>
      %12 = tpu.matmul %11, %8, %cst {dimension_numbers = #tpu.dot_dimension_numbers<[1], [0], [0], [1], [0, 0, 1, 1], [], []>} : vector<16x16xf32>, vector<16x16xf32>, vector<16x16xf32> -> vector<16x16xf32>
      %cst_9 = arith.constant dense<0.000000e+00> : vector<16x16xf32>
      %13 = tpu.matmul %5, %12, %cst_9 {dimension_numbers = #tpu.dot_dimension_numbers<[1], [0], [0], [1], [0, 0, 1, 1], [], []>} : vector<16x16xf32>, vector<16x16xf32>, vector<16x16xf32> -> vector<16x16xf32>
      %14 = arith.index_cast %2 : i32 to index
      %c0_10 = arith.constant 0 : index
      %c0_11 = arith.constant 0 : index
      %c0_12 = arith.constant 0 : index
      %15 = vector.load %arg4[%14, %c0_10, %c0_11, %c0_12] : memref<2x4x16x16xf32, #tpu.memory_space<vmem>>, vector<1x1x16x16xf32>
      %16 = vector.shape_cast %15 : vector<1x1x16x16xf32> to vector<16x16xf32>
      %17 = vector.shape_cast %13 : vector<16x16xf32> to vector<1x1x16x16xf32>
      tpu.vector_store %arg4[%14, %c0_10, %c0_11, %c0_12], %17 {strides = array<i32>} : memref<2x4x16x16xf32, #tpu.memory_space<vmem>>, vector<1x1x16x16xf32>,
      %18 = arith.index_cast %2 : i32 to index
      %c1 = arith.constant 1 : index
      %c0_13 = arith.constant 0 : index
      %c0_14 = arith.constant 0 : index
      %19 = vector.load %arg1[%18, %c1, %c0_13, %c0_14] : memref<2x4x16x16xf32, #tpu.memory_space<vmem>>, vector<1x1x16x16xf32>
      %20 = vector.shape_cast %19 : vector<1x1x16x16xf32> to vector<16x16xf32>
      %cst_15 = arith.constant dense<0.000000e+00> : vector<16x16xf32>
      %21 = tpu.matmul %20, %8, %cst_15 {dimension_numbers = #tpu.dot_dimension_numbers<[1], [0], [0], [1], [0, 0, 1, 1], [], []>} : vector<16x16xf32>, vector<16x16xf32>, vector<16x16xf32> -> vector<16x16xf32>
      %cst_16 = arith.constant dense<0.000000e+00> : vector<16x16xf32>
      %22 = tpu.matmul %5, %21, %cst_16 {dimension_numbers = #tpu.dot_dimension_numbers<[1], [0], [0], [1], [0, 0, 1, 1], [], []>} : vector<16x16xf32>, vector<16x16xf32>, vector<16x16xf32> -> vector<16x16xf32>
      %23 = arith.index_cast %2 : i32 to index
      %c1_17 = arith.constant 1 : index
      %c0_18 = arith.constant 0 : index
      %c0_19 = arith.constant 0 : index
      %24 = vector.load %arg4[%23, %c1_17, %c0_18, %c0_19] : memref<2x4x16x16xf32, #tpu.memory_space<vmem>>, vector<1x1x16x16xf32>
      %25 = vector.shape_cast %24 : vector<1x1x16x16xf32> to vector<16x16xf32>
      %26 = vector.shape_cast %22 : vector<16x16xf32> to vector<1x1x16x16xf32>
      tpu.vector_store %arg4[%23, %c1_17, %c0_18, %c0_19], %26 {strides = array<i32>} : memref<2x4x16x16xf32, #tpu.memory_space<vmem>>, vector<1x1x16x16xf32>,
      %27 = arith.index_cast %2 : i32 to index
      %c2 = arith.constant 2 : index
      %c0_20 = arith.constant 0 : index
      %c0_21 = arith.constant 0 : index
      %28 = vector.load %arg1[%27, %c2, %c0_20, %c0_21] : memref<2x4x16x16xf32, #tpu.memory_space<vmem>>, vector<1x1x16x16xf32>
      %29 = vector.shape_cast %28 : vector<1x1x16x16xf32> to vector<16x16xf32>
      %cst_22 = arith.constant dense<0.000000e+00> : vector<16x16xf32>
      %30 = tpu.matmul %29, %8, %cst_22 {dimension_numbers = #tpu.dot_dimension_numbers<[1], [0], [0], [1], [0, 0, 1, 1], [], []>} : vector<16x16xf32>, vector<16x16xf32>, vector<16x16xf32> -> vector<16x16xf32>
      %cst_23 = arith.constant dense<0.000000e+00> : vector<16x16xf32>
      %31 = tpu.matmul %5, %30, %cst_23 {dimension_numbers = #tpu.dot_dimension_numbers<[1], [0], [0], [1], [0, 0, 1, 1], [], []>} : vector<16x16xf32>, vector<16x16xf32>, vector<16x16xf32> -> vector<16x16xf32>
      %32 = arith.index_cast %2 : i32 to index
      %c2_24 = arith.constant 2 : index
      %c0_25 = arith.constant 0 : index
      %c0_26 = arith.constant 0 : index
      %33 = vector.load %arg4[%32, %c2_24, %c0_25, %c0_26] : memref<2x4x16x16xf32, #tpu.memory_space<vmem>>, vector<1x1x16x16xf32>
      %34 = vector.shape_cast %33 : vector<1x1x16x16xf32> to vector<16x16xf32>
      %35 = vector.shape_cast %31 : vector<16x16xf32> to vector<1x1x16x16xf32>
      tpu.vector_store %arg4[%32, %c2_24, %c0_25, %c0_26], %35 {strides = array<i32>} : memref<2x4x16x16xf32, #tpu.memory_space<vmem>>, vector<1x1x16x16xf32>,
      %36 = arith.index_cast %2 : i32 to index
      %c3 = arith.constant 3 : index
      %c0_27 = arith.constant 0 : index
      %c0_28 = arith.constant 0 : index
      %37 = vector.load %arg1[%36, %c3, %c0_27, %c0_28] : memref<2x4x16x16xf32, #tpu.memory_space<vmem>>, vector<1x1x16x16xf32>
      %38 = vector.shape_cast %37 : vector<1x1x16x16xf32> to vector<16x16xf32>
      %cst_29 = arith.constant dense<0.000000e+00> : vector<16x16xf32>
      %39 = tpu.matmul %38, %8, %cst_29 {dimension_numbers = #tpu.dot_dimension_numbers<[1], [0], [0], [1], [0, 0, 1, 1], [], []>} : vector<16x16xf32>, vector<16x16xf32>, vector<16x16xf32> -> vector<16x16xf32>
      %cst_30 = arith.constant dense<0.000000e+00> : vector<16x16xf32>
      %40 = tpu.matmul %5, %39, %cst_30 {dimension_numbers = #tpu.dot_dimension_numbers<[1], [0], [0], [1], [0, 0, 1, 1], [], []>} : vector<16x16xf32>, vector<16x16xf32>, vector<16x16xf32> -> vector<16x16xf32>
      %41 = arith.index_cast %2 : i32 to index
      %c3_31 = arith.constant 3 : index
      %c0_32 = arith.constant 0 : index
      %c0_33 = arith.constant 0 : index
      %42 = vector.load %arg4[%41, %c3_31, %c0_32, %c0_33] : memref<2x4x16x16xf32, #tpu.memory_space<vmem>>, vector<1x1x16x16xf32>
      %43 = vector.shape_cast %42 : vector<1x1x16x16xf32> to vector<16x16xf32>
      %44 = vector.shape_cast %40 : vector<16x16xf32> to vector<1x1x16x16xf32>
      tpu.vector_store %arg4[%41, %c3_31, %c0_32, %c0_33], %44 {strides = array<i32>} : memref<2x4x16x16xf32, #tpu.memory_space<vmem>>, vector<1x1x16x16xf32>,
    }
    %c2_i32_0 = arith.constant 2 : i32
    return
  }
  func.func @transform_0(%arg0: i32) -> (i32, i32, i32, i32) {
    %c0_i32 = arith.constant 0 : i32
    %c0_i32_0 = arith.constant 0 : i32
    %c0_i32_1 = arith.constant 0 : i32
    %c0_i32_2 = arith.constant 0 : i32
    return %arg0, %c0_i32, %c0_i32_0, %c0_i32_1 : i32, i32, i32, i32
  }
  func.func @transform_1(%arg0: i32) -> (i32, i32, i32) {
    %c0_i32 = arith.constant 0 : i32
    %c0_i32_0 = arith.constant 0 : i32
    %c0_i32_1 = arith.constant 0 : i32
    return %arg0, %c0_i32, %c0_i32_0 : i32, i32, i32
  }
  func.func @transform_2(%arg0: i32) -> (i32, i32, i32) {
    %c0_i32 = arith.constant 0 : i32
    %c0_i32_0 = arith.constant 0 : i32
    %c0_i32_1 = arith.constant 0 : i32
    return %arg0, %c0_i32, %c0_i32_0 : i32, i32, i32
  }
  func.func @transform_3(%arg0: i32) -> (i32, i32, i32, i32) {
    %c0_i32 = arith.constant 0 : i32
    %c0_i32_0 = arith.constant 0 : i32
    %c0_i32_1 = arith.constant 0 : i32
    %c0_i32_2 = arith.constant 0 : i32
    return %arg0, %c0_i32, %c0_i32_0, %c0_i32_1 : i32, i32, i32, i32
  }
}

</mosaic_0001>

<llo_original>
// kernel: tpu_custom_call.1
$region0: #{tpu_custom_call.1}
  #allocation0 [shape = 'u32[]', space=smem, size = 0x4, offset = 0x4, fixed_abs, tag = 'smem constant byte address 0x4 - core index']
  #allocation1 [shape = 'u32[72,128]{1,0:T(1,128)}', space=vmem, size = 0x9000, scoped, tag = 'internal scratch']
  %s0 = inlined_call_operand.hbm [shape: f32[2,4,16,16], index: 0, kind: input, shape index: {}]
  %s1 = inlined_call_operand.hbm [shape: f32[2,16,16], index: 1, kind: input, shape index: {}]
  %s2 = inlined_call_operand.hbm [shape: f32[2,16,16], index: 2, kind: input, shape index: {}]
  %s3 = inlined_call_operand.hbm [shape: f32[2,4,16,16], index: 3, kind: output, shape index: {}]
  %s4 = sld [smem:[#allocation0]]
  $region41: #{tpu_custom_call.1} parent=0
    _
  %s6 = ssub.s32 1, %s4
  %s7 = scalar_select 0, %s6, %s4
  $region1: #{tpu_custom_call.1} parent=0
    #allocation2 [shape = 'u8[65536]{0}', space=vmem, size = 0x10000, scoped, tag = 'input window, operand 0, single buffered']
    #allocation3 [shape = 's32[1]{0}', space=sflag, size = 0x4, scoped, tag = 'scoped memory for tpu_custom_call.1']
    #allocation4 [shape = 's32[1]{0}', space=sflag, size = 0x4, scoped, tag = 'scoped memory for tpu_custom_call.1']
    #allocation5 [shape = 'u8[16384]{0}', space=vmem, size = 0x4000, scoped, tag = 'input window, operand 1, single buffered']
    #allocation6 [shape = 's32[1]{0}', space=sflag, size = 0x4, scoped, tag = 'scoped memory for tpu_custom_call.1']
    #allocation7 [shape = 'u8[16384]{0}', space=vmem, size = 0x4000, scoped, tag = 'input window, operand 2, single buffered']
    #allocation8 [shape = 'u8[65536]{0}', space=vmem, size = 0x10000, scoped, tag = 'output window, operand 0, single buffered']
    %8 = vsyncpa [#allocation3], 0
    %9 = vsyncpa [#allocation6], 0
    %10 = vsyncpa [#allocation4], 0
    // Predicated region
    $region2: #{tpu_custom_call.1} parent=1 // pred_check
      _
    $region3: #{tpu_custom_call.1} parent=1 // pred_check_branch
      %12 = sbr.rel (0) target = $region5
    $region4: #{tpu_custom_call.1} parent=1 // pred_region
      %14 = vsyncadd [#allocation3], 0
      %s15 = sshll.u32 %s0, 4
      %s16 = int_to_ptr.hbm [resolvable:$true] %s15
      %s17 = sshll.u32 [#allocation2], 4
      %s18 = int_to_ptr.vmem [resolvable:$true] %s17
      %23 = dma.hbm_to_vmem [thread:$0]  %s16, 2048, %s18, [#allocation3], 128, 128, 8
    $region5: #{tpu_custom_call.1} parent=1 // pred_fallthru
      _
    // Predicated region
    $region6: #{tpu_custom_call.1} parent=1 // pred_check
      _
    $region7: #{tpu_custom_call.1} parent=1 // pred_check_branch
      %25 = sbr.rel (0) target = $region9
    $region8: #{tpu_custom_call.1} parent=1 // pred_region
      %27 = vsyncadd [#allocation6], 0
      %s28 = sshll.u32 %s1, 4
      %s29 = int_to_ptr.hbm [resolvable:$true] %s28
      %s30 = sshll.u32 [#allocation5], 4
      %s31 = int_to_ptr.vmem [resolvable:$true] %s30
      %36 = dma.hbm_to_vmem [thread:$0]  %s29, 512, %s31, [#allocation6], 128, 128, 8
    $region9: #{tpu_custom_call.1} parent=1 // pred_fallthru
      _
    // Predicated region
    $region10: #{tpu_custom_call.1} parent=1 // pred_check
      _
    $region11: #{tpu_custom_call.1} parent=1 // pred_check_branch
      %38 = sbr.rel (0) target = $region13
    $region12: #{tpu_custom_call.1} parent=1 // pred_region
      %40 = vsyncadd [#allocation6], 0
      %s41 = sshll.u32 %s2, 4
      %s42 = int_to_ptr.hbm [resolvable:$true] %s41
      %s43 = sshll.u32 [#allocation7], 4
      %s44 = int_to_ptr.vmem [resolvable:$true] %s43
      %49 = dma.hbm_to_vmem [thread:$0]  %s42, 512, %s44, [#allocation6], 128, 128, 8
    $region13: #{tpu_custom_call.1} parent=1 // pred_fallthru
      _
    // Predicated region
    $region14: #{tpu_custom_call.1} parent=1 // pred_check
      _
    $region15: #{tpu_custom_call.1} parent=1 // pred_check_branch
      %51 = sbr.rel (0) target = $region17
    $region16: #{tpu_custom_call.1} parent=1 // pred_region
      %53 = dma.done [#allocation3], 2048
    $region17: #{tpu_custom_call.1} parent=1 // pred_fallthru
      _
    // Predicated region
    $region18: #{tpu_custom_call.1} parent=1 // pred_check
      _
    $region19: #{tpu_custom_call.1} parent=1 // pred_check_branch
      %55 = sbr.rel (0) target = $region21
    $region20: #{tpu_custom_call.1} parent=1 // pred_region
      %57 = dma.done [#allocation6], 512
    $region21: #{tpu_custom_call.1} parent=1 // pred_fallthru
      _
    // Predicated region
    $region22: #{tpu_custom_call.1} parent=1 // pred_check
      _
    $region23: #{tpu_custom_call.1} parent=1 // pred_check_branch
      %59 = sbr.rel (0) target = $region25
    $region24: #{tpu_custom_call.1} parent=1 // pred_region
      %61 = dma.done [#allocation6], 512
    $region25: #{tpu_custom_call.1} parent=1 // pred_fallthru
      _
    loop: start=0, step=1, limit=2
    $region26: #{tpu_custom_call.1} parent=1 // loop_pre_header
      _
    $region27: #{tpu_custom_call.1} parent=1 // loop_header
      %s63 = sphi 0, %s67
      %p64 = scmp.ge.s32.totalorder %s63, 2
    $region28: #{tpu_custom_call.1} parent=1 // loop_header_branch
      %66 = sbr.rel (%p64) target = $region32
    $region29: #{tpu_custom_call.1} parent=1 // loop_body
      %s68 = smul.u32 %s63, 16
      %s69 = scalar_lea.vmem [#allocation5], %s68
      %v70 = vld [vmem:[%s69] sm:$0xff]
      %v71 = vld [vmem:[%s69 + $0x8] sm:$0xff]
      %s72 = scalar_lea.vmem [#allocation7], %s68
      %v73 = vld [vmem:[%s72] sm:$0xff]
      %v74 = vld [vmem:[%s72 + $0x8] sm:$0xff]
      %s75 = smul.u32 %s63, 64
      %s76 = scalar_lea.vmem [#allocation2], %s75
      %v77 = vld [vmem:[%s76] sm:$0xff]
      %v78 = vld [vmem:[%s76 + $0x8] sm:$0xff]
      %vm79 = vcmask 130048
      %v81 = vsel %vm79, %v77, 0
      %v84 = vsel %vm79, %v78, 0
      %86 = vmatpush.msra.mxu0 0.0
      %87 = vmatpush.msra.mxu0 0.0
      %88 = vmatpush.msra.mxu0 0.0
      %89 = vmatpush.msra.mxu0 0.0
      %90 = vmatpush.msra.mxu0 0.0
      %91 = vmatpush.msra.mxu0 0.0
      %92 = vmatpush.msra.mxu0 0.0
      %93 = vmatpush.msra.mxu0 0.0
      %94 = vmatpush.msra.mxu0 0.0
      %95 = vmatpush.msra.mxu0 0.0
      %96 = vmatpush.msra.mxu0 0.0
      %97 = vmatpush.msra.mxu0 0.0
      %98 = vmatpush.msra.mxu0 0.0
      %99 = vmatpush.msra.mxu0 0.0
      %100 = vmatpush.msra.mxu0 %v74
      %101 = vmatpush.msra.mxu0 %v73
      %102 = vmatmul.f32.gmra.mxu0 %v81
      %v103 = vpop.f32.mrf.mxu0
      %v104 = vadd.f32 0.0, %v103
      %105 = vmatmul.f32.gmra.mxu0 %v84
      %v106 = vpop.f32.mrf.mxu0
      %v107 = vadd.f32 0.0, %v106
      %108 = vdwg.mxu0
      %v110 = vsel %vm79, %v70, 0
      %v113 = vsel %vm79, %v71, 0
      %115 = vmatpush.msra.mxu0 0.0
      %116 = vmatpush.msra.mxu0 0.0
      %117 = vmatpush.msra.mxu0 0.0
      %118 = vmatpush.msra.mxu0 0.0
      %119 = vmatpush.msra.mxu0 0.0
      %120 = vmatpush.msra.mxu0 0.0
      %121 = vmatpush.msra.mxu0 0.0
      %122 = vmatpush.msra.mxu0 0.0
      %123 = vmatpush.msra.mxu0 0.0
      %124 = vmatpush.msra.mxu0 0.0
      %125 = vmatpush.msra.mxu0 0.0
      %126 = vmatpush.msra.mxu0 0.0
      %127 = vmatpush.msra.mxu0 0.0
      %128 = vmatpush.msra.mxu0 0.0
      %129 = vmatpush.msra.mxu0 %v107
      %130 = vmatpush.msra.mxu0 %v104
      %131 = vmatmul.f32.gmra.mxu0 %v110
      %v132 = vpop.f32.mrf.mxu0
      %v133 = vadd.f32 0.0, %v132
      %134 = vmatmul.f32.gmra.mxu0 %v113
      %v135 = vpop.f32.mrf.mxu0
      %v136 = vadd.f32 0.0, %v135
      %137 = vdwg.mxu0
      %s138 = scalar_lea.vmem [#allocation8], %s75
      %139 = vst.msk [vmem:[%s138] sm:$0xff] %vm79, %v133
      %140 = vst.msk [vmem:[%s138 + $0x8] sm:$0xff] %vm79, %v136
      %s141 = sadd.s32 16, %s75
      %s142 = scalar_lea.vmem [#allocation2], %s141
      %v143 = vld [vmem:[%s142] sm:$0xff]
      %v144 = vld [vmem:[%s142 + $0x8] sm:$0xff]
      %v146 = vsel %vm79, %v143, 0
      %v149 = vsel %vm79, %v144, 0
      %151 = vmatpush.msra.mxu0 0.0
      %152 = vmatpush.msra.mxu0 0.0
      %153 = vmatpush.msra.mxu0 0.0
      %154 = vmatpush.msra.mxu0 0.0
      %155 = vmatpush.msra.mxu0 0.0
      %156 = vmatpush.msra.mxu0 0.0
      %157 = vmatpush.msra.mxu0 0.0
      %158 = vmatpush.msra.mxu0 0.0
      %159 = vmatpush.msra.mxu0 0.0
      %160 = vmatpush.msra.mxu0 0.0
      %161 = vmatpush.msra.mxu0 0.0
      %162 = vmatpush.msra.mxu0 0.0
      %163 = vmatpush.msra.mxu0 0.0
      %164 = vmatpush.msra.mxu0 0.0
      %165 = vmatpush.msra.mxu0 %v74
      %166 = vmatpush.msra.mxu0 %v73
      %167 = vmatmul.f32.gmra.mxu0 %v146
      %v168 = vpop.f32.mrf.mxu0
      %v169 = vadd.f32 0.0, %v168
      %170 = vmatmul.f32.gmra.mxu0 %v149
      %v171 = vpop.f32.mrf.mxu0
      %v172 = vadd.f32 0.0, %v171
      %173 = vdwg.mxu0
      %174 = vmatpush.msra.mxu0 0.0
      %175 = vmatpush.msra.mxu0 0.0
      %176 = vmatpush.msra.mxu0 0.0
      %177 = vmatpush.msra.mxu0 0.0
      %178 = vmatpush.msra.mxu0 0.0
      %179 = vmatpush.msra.mxu0 0.0
      %180 = vmatpush.msra.mxu0 0.0
      %181 = vmatpush.msra.mxu0 0.0
      %182 = vmatpush.msra.mxu0 0.0
      %183 = vmatpush.msra.mxu0 0.0
      %184 = vmatpush.msra.mxu0 0.0
      %185 = vmatpush.msra.mxu0 0.0
      %186 = vmatpush.msra.mxu0 0.0
      %187 = vmatpush.msra.mxu0 0.0
      %188 = vmatpush.msra.mxu0 %v172
      %189 = vmatpush.msra.mxu0 %v169
      %190 = vmatmul.f32.gmra.mxu0 %v110
      %v191 = vpop.f32.mrf.mxu0
      %v192 = vadd.f32 0.0, %v191
      %193 = vmatmul.f32.gmra.mxu0 %v113
      %v194 = vpop.f32.mrf.mxu0
      %v195 = vadd.f32 0.0, %v194
      %196 = vdwg.mxu0
      %s197 = scalar_lea.vmem [#allocation8], %s141
      %198 = vst.msk [vmem:[%s197] sm:$0xff] %vm79, %v192
      %199 = vst.msk [vmem:[%s197 + $0x8] sm:$0xff] %vm79, %v195
      %s200 = sadd.s32 32, %s75
      %s201 = scalar_lea.vmem [#allocation2], %s200
      %v202 = vld [vmem:[%s201] sm:$0xff]
      %v203 = vld [vmem:[%s201 + $0x8] sm:$0xff]
      %v205 = vsel %vm79, %v202, 0
      %v208 = vsel %vm79, %v203, 0
      %210 = vmatpush.msra.mxu0 0.0
      %211 = vmatpush.msra.mxu0 0.0
      %212 = vmatpush.msra.mxu0 0.0
      %213 = vmatpush.msra.mxu0 0.0
      %214 = vmatpush.msra.mxu0 0.0
      %215 = vmatpush.msra.mxu0 0.0
      %216 = vmatpush.msra.mxu0 0.0
      %217 = vmatpush.msra.mxu0 0.0
      %218 = vmatpush.msra.mxu0 0.0
      %219 = vmatpush.msra.mxu0 0.0
      %220 = vmatpush.msra.mxu0 0.0
      %221 = vmatpush.msra.mxu0 0.0
      %222 = vmatpush.msra.mxu0 0.0
      %223 = vmatpush.msra.mxu0 0.0
      %224 = vmatpush.msra.mxu0 %v74
      %225 = vmatpush.msra.mxu0 %v73
      %226 = vmatmul.f32.gmra.mxu0 %v205
      %v227 = vpop.f32.mrf.mxu0
      %v228 = vadd.f32 0.0, %v227
      %229 = vmatmul.f32.gmra.mxu0 %v208
      %v230 = vpop.f32.mrf.mxu0
      %v231 = vadd.f32 0.0, %v230
      %232 = vdwg.mxu0
      %233 = vmatpush.msra.mxu0 0.0
      %234 = vmatpush.msra.mxu0 0.0
      %235 = vmatpush.msra.mxu0 0.0
      %236 = vmatpush.msra.mxu0 0.0
      %237 = vmatpush.msra.mxu0 0.0
      %238 = vmatpush.msra.mxu0 0.0
      %239 = vmatpush.msra.mxu0 0.0
      %240 = vmatpush.msra.mxu0 0.0
      %241 = vmatpush.msra.mxu0 0.0
      %242 = vmatpush.msra.mxu0 0.0
      %243 = vmatpush.msra.mxu0 0.0
      %244 = vmatpush.msra.mxu0 0.0
      %245 = vmatpush.msra.mxu0 0.0
      %246 = vmatpush.msra.mxu0 0.0
      %247 = vmatpush.msra.mxu0 %v231
      %248 = vmatpush.msra.mxu0 %v228
      %249 = vmatmul.f32.gmra.mxu0 %v110
      %v250 = vpop.f32.mrf.mxu0
      %v251 = vadd.f32 0.0, %v250
      %252 = vmatmul.f32.gmra.mxu0 %v113
      %v253 = vpop.f32.mrf.mxu0
      %v254 = vadd.f32 0.0, %v253
      %255 = vdwg.mxu0
      %s256 = scalar_lea.vmem [#allocation8], %s200
      %257 = vst.msk [vmem:[%s256] sm:$0xff] %vm79, %v251
      %258 = vst.msk [vmem:[%s256 + $0x8] sm:$0xff] %vm79, %v254
      %s259 = sadd.s32 48, %s75
      %s260 = scalar_lea.vmem [#allocation2], %s259
      %v261 = vld [vmem:[%s260] sm:$0xff]
      %v262 = vld [vmem:[%s260 + $0x8] sm:$0xff]
      %v264 = vsel %vm79, %v261, 0
      %v267 = vsel %vm79, %v262, 0
      %269 = vmatpush.msra.mxu0 0.0
      %270 = vmatpush.msra.mxu0 0.0
      %271 = vmatpush.msra.mxu0 0.0
      %272 = vmatpush.msra.mxu0 0.0
      %273 = vmatpush.msra.mxu0 0.0
      %274 = vmatpush.msra.mxu0 0.0
      %275 = vmatpush.msra.mxu0 0.0
      %276 = vmatpush.msra.mxu0 0.0
      %277 = vmatpush.msra.mxu0 0.0
      %278 = vmatpush.msra.mxu0 0.0
      %279 = vmatpush.msra.mxu0 0.0
      %280 = vmatpush.msra.mxu0 0.0
      %281 = vmatpush.msra.mxu0 0.0
      %282 = vmatpush.msra.mxu0 0.0
      %283 = vmatpush.msra.mxu0 %v74
      %284 = vmatpush.msra.mxu0 %v73
      %285 = vmatmul.f32.gmra.mxu0 %v264
      %v286 = vpop.f32.mrf.mxu0
      %v287 = vadd.f32 0.0, %v286
      %288 = vmatmul.f32.gmra.mxu0 %v267
      %v289 = vpop.f32.mrf.mxu0
      %v290 = vadd.f32 0.0, %v289
      %291 = vdwg.mxu0
      %292 = vmatpush.msra.mxu0 0.0
      %293 = vmatpush.msra.mxu0 0.0
      %294 = vmatpush.msra.mxu0 0.0
      %295 = vmatpush.msra.mxu0 0.0
      %296 = vmatpush.msra.mxu0 0.0
      %297 = vmatpush.msra.mxu0 0.0
      %298 = vmatpush.msra.mxu0 0.0
      %299 = vmatpush.msra.mxu0 0.0
      %300 = vmatpush.msra.mxu0 0.0
      %301 = vmatpush.msra.mxu0 0.0
      %302 = vmatpush.msra.mxu0 0.0
      %303 = vmatpush.msra.mxu0 0.0
      %304 = vmatpush.msra.mxu0 0.0
      %305 = vmatpush.msra.mxu0 0.0
      %306 = vmatpush.msra.mxu0 %v290
      %307 = vmatpush.msra.mxu0 %v287
      %308 = vmatmul.f32.gmra.mxu0 %v110
      %v309 = vpop.f32.mrf.mxu0
      %v310 = vadd.f32 0.0, %v309
      %311 = vmatmul.f32.gmra.mxu0 %v113
      %v312 = vpop.f32.mrf.mxu0
      %v313 = vadd.f32 0.0, %v312
      %314 = vdwg.mxu0
      %s315 = scalar_lea.vmem [#allocation8], %s259
      %316 = vst.msk [vmem:[%s315] sm:$0xff] %vm79, %v310
      %317 = vst.msk [vmem:[%s315 + $0x8] sm:$0xff] %vm79, %v313
    $region30: #{tpu_custom_call.1} parent=1 // loop_footer
      %s67 = sadd.s32 1, %s63
    $region31: #{tpu_custom_call.1} parent=1 // loop_footer_branch
      %62 = sbr.rel target = $region27
    $region32: #{tpu_custom_call.1} parent=1 // loop_exit
      _
    // Predicated region
    $region33: #{tpu_custom_call.1} parent=1 // pred_check
      _
    $region34: #{tpu_custom_call.1} parent=1 // pred_check_branch
      %319 = sbr.rel (0) target = $region36
    $region35: #{tpu_custom_call.1} parent=1 // pred_region
      %321 = vsyncadd [#allocation4], 0
      %s322 = sshll.u32 [#allocation8], 4
      %s323 = int_to_ptr.vmem [resolvable:$true] %s322
      %s324 = sshll.u32 %s3, 4
      %s325 = int_to_ptr.hbm [resolvable:$true] %s324
      %330 = dma.vmem_to_hbm [thread:$0]  %s323, 2048, %s325, [#allocation4], 128, 128, 8
    $region36: #{tpu_custom_call.1} parent=1 // pred_fallthru
      _
    // Predicated region
    $region37: #{tpu_custom_call.1} parent=1 // pred_check
      _
    $region38: #{tpu_custom_call.1} parent=1 // pred_check_branch
      %332 = sbr.rel (0) target = $region40
    $region39: #{tpu_custom_call.1} parent=1 // pred_region
      %334 = dma.done [#allocation4], 2048
    $region40: #{tpu_custom_call.1} parent=1 // pred_fallthru
      _
    %335 = vsyncpa [#allocation3], 1
    %336 = vsyncpa [#allocation6], 1
    %337 = vsyncpa [#allocation4], 1

</llo_original>
